<compile_context>
chip_gen: v5e
topology: v5e:2x2
jax: 0.10.0
libtpu: 0.0.40
codegen_flags: <defaults>
</compile_context>

<pallas_src>
import jax
import jax.numpy as jnp
from jax.experimental import pallas as pl
from jax.experimental.pallas import tpu as pltpu


def _scale_kernel(x_ref, s_ref, o_ref):
    # x_ref: (TR, TT) tile of the flattened input.
    # s_ref: (TR, 1) per-row scale; broadcasts along the lane axis on the VPU.
    o_ref[...] = (x_ref[...] * s_ref[...]).astype(o_ref.dtype)


def _cdiv(a, b):
    return -(-a // b)


def _round_up(x, m):
    return _cdiv(x, m) * m


def _round_down(x, m):
    return (x // m) * m


def _vmem_budget():
    """Returns (buffer_footprint_budget_bytes, vmem_limit_bytes) per chip gen."""
    try:
        info = pltpu.get_tpu_info()
        phys = getattr(info, "vmem_capacity_bytes", 0) or 0
        if phys >= 100 * 1024 * 1024:
            # v5e / v6e: 128 MiB physical VMEM per TensorCore.  Large tiles
            # amortize the ~0.35us per-grid-step overhead; 48 MiB of buffers
            # under a 64 MiB scoped limit leaves headroom for Mosaic scratch.
            return 48 * 1024 * 1024, 64 * 1024 * 1024
    except Exception:
        pass
    # v7x (64 MiB physical per TensorCore) or unknown chip: stay conservative
    # so a config tuned for 128 MiB parts can never fail to fit.
    return 30 * 1024 * 1024, 40 * 1024 * 1024


def scale_forward(x, scale, *, max_lanes=8192):
    """x: (B, F, T); scale: (1, F, 1). Returns x * scale (dtype of x)."""
    B, F, T = x.shape
    assert scale.shape == (1, F, 1), scale.shape

    rows = B * F
    # Collapse (B, F) into one row axis -> lane-dense 2D streaming problem.
    x2 = x.reshape(rows, T)
    # Hoist the scale broadcast out of the kernel: one tiny (B*F)-element XLA
    # op; inside the kernel only a (TR, 1) lane-broadcast multiply remains.
    s2 = jnp.broadcast_to(scale.reshape(1, F), (B, F)).reshape(rows, 1)

    elem_bytes = jnp.dtype(x.dtype).itemsize
    # Dtype-aware sublane granule: 8 for 32-bit, 16 for bf16, 32 for int8/fp8.
    sub = max(8, 32 // elem_bytes)

    footprint_budget, vmem_limit = _vmem_budget()

    # --- Lane tile: grow first (lane-dense unmasked stores are the big lever).
    lane_cap = max(128, _round_down(max_lanes, 128))
    if T < 128:
        # Full-extent exception for genuinely tiny lane dims.
        # TODO(synk): if production T < 128 and the producer can hand over
        # F-last data without a transpose, a lanes=F layout avoids masked
        # partial stores.
        tt = T
    else:
        tt = min(lane_cap, _round_down(T, 128))

    # --- Row tile: fill the remaining VMEM budget, but keep >= ~4 row blocks
    # so the outer "parallel" axis can be sharded across v7x's 2 TensorCores.
    # Per-row VMEM cost: x + out double-buffered, plus the (TR, 1) scale block
    # which pads to 128 lanes (~512 B per row per buffer), double-buffered.
    per_row_bytes = 4 * tt * elem_bytes + 2 * 128 * 4
    tr_budget = max(sub, footprint_budget // per_row_bytes)
    if rows < sub:
        tr = rows  # full-extent exception for tiny row counts
    else:
        target_row_blocks = min(4, _cdiv(rows, sub))
        tr_parallel_cap = _round_up(_cdiv(rows, target_row_blocks), sub)
        tr = min(tr_budget, tr_parallel_cap)
        tr = max(sub, _round_down(tr, sub))

    grid = (_cdiv(rows, tr), _cdiv(T, tt))

    out2 = pl.pallas_call(
        _scale_kernel,
        out_shape=jax.ShapeDtypeStruct((rows, T), x.dtype),
        grid_spec=pltpu.PrefetchScalarGridSpec(
            num_scalar_prefetch=0,
            grid=grid,
            in_specs=[
                pl.BlockSpec((tr, tt), lambda r, t: (r, t)),
                # Scale tile depends only on the row-block index; with the lane
                # axis innermost it is reused across consecutive grid steps
                # instead of being re-fetched.
                pl.BlockSpec((tr, 1), lambda r, t: (r, 0)),
            ],
            out_specs=pl.BlockSpec((tr, tt), lambda r, t: (r, t)),
        ),
        compiler_params=pltpu.CompilerParams(
            dimension_semantics=("parallel", "parallel"),
            vmem_limit_bytes=vmem_limit,
        ),
    )(x2, s2)
    return out2.reshape(B, F, T)


if __name__ == "__main__":
    key = jax.random.PRNGKey(0)
    kx, _ = jax.random.split(key)

    # --- Small demo shapes consistent with the module (B=2, F=4, T=16).
    B, F, T = 2, 4, 16
    x = jax.random.normal(kx, (B, F, T), dtype=jnp.float32)
    # Module __init__ would set scale = ones((1, F, 1)); use a deterministic
    # non-trivial value so the broadcast path is actually exercised.
    scale = jnp.ones((1, F, 1), jnp.float32) + 0.1 * jnp.arange(
        F, dtype=jnp.float32
    ).reshape(1, F, 1)

    out = jax.block_until_ready(scale_forward(x, scale))
    ref = x * scale  # pure-JAX reference of the PyTorch forward
    assert out.shape == x.shape and out.dtype == x.dtype
    assert jnp.allclose(out, ref, atol=1e-6, rtol=1e-6)

    # --- Tileable lane-dense shape (multiples of 8 / 128): grid > 1 row
    # blocks, 128-wide lanes, unmasked stores.
    B2, F2, T2 = 4, 16, 512
    x_big = jax.random.normal(kx, (B2, F2, T2), dtype=jnp.float32)
    scale_big = 1.0 + 0.01 * jnp.arange(F2, dtype=jnp.float32).reshape(1, F2, 1)
    out_big = jax.block_until_ready(scale_forward(x_big, scale_big))
    assert jnp.allclose(out_big, x_big * scale_big, atol=1e-6, rtol=1e-6)

    # --- Ragged shape: exercises cdiv tiling with masked edge blocks on both
    # the row and lane axes (rows=15 not /8, T=200 not /128).
    B3, F3, T3 = 3, 5, 200
    x_rag = jax.random.normal(kx, (B3, F3, T3), dtype=jnp.float32)
    scale_rag = 0.5 + 0.2 * jnp.arange(F3, dtype=jnp.float32).reshape(1, F3, 1)
    out_rag = jax.block_until_ready(scale_forward(x_rag, scale_rag))
    assert jnp.allclose(out_rag, x_rag * scale_rag, atol=1e-6, rtol=1e-6)

    # --- bf16 input: exercises the dtype-aware sublane granule (16).
    B4, F4, T4 = 2, 16, 384
    x_bf = jax.random.normal(kx, (B4, F4, T4), dtype=jnp.float32).astype(
        jnp.bfloat16
    )
    scale_bf = (1.0 + 0.05 * jnp.arange(F4, dtype=jnp.float32)).astype(
        jnp.bfloat16
    ).reshape(1, F4, 1)
    out_bf = jax.block_until_ready(scale_forward(x_bf, scale_bf))
    assert out_bf.dtype == jnp.bfloat16
    assert jnp.allclose(
        out_bf.astype(jnp.float32),
        (x_bf * scale_bf).astype(jnp.float32),
        atol=1e-2,
        rtol=1e-2,
    )

    print("KERNEL_OK")
</pallas_src>

<mosaic_0001>
module attributes {stable_mosaic.version = 11 : i64} {
  func.func @_scale_kernel(%arg0: i32, %arg1: i32, %arg2: memref<8x16xf32, #tpu.memory_space<vmem>>, %arg3: memref<8x1xf32, #tpu.memory_space<vmem>>, %arg4: memref<8x16xf32, #tpu.memory_space<vmem>>) attributes {dimension_semantics = [#tpu.dimension_semantics<parallel>, #tpu.dimension_semantics<parallel>], iteration_bounds = array<i64: 1, 1>, scalar_prefetch = 0 : i64, scratch_operands = 0 : i64, tpu.core_type = #tpu.core_type<tc>, window_params = [{transform_indices = @transform_0, window_bounds = array<i64: 8, 16>}, {transform_indices = @transform_1, window_bounds = array<i64: 8, 1>}, {transform_indices = @transform_2, window_bounds = array<i64: 8, 16>}]} {
    %c0 = arith.constant 0 : index
    %c0_0 = arith.constant 0 : index
    %0 = vector.load %arg2[%c0, %c0_0] : memref<8x16xf32, #tpu.memory_space<vmem>>, vector<8x16xf32>
    %c0_1 = arith.constant 0 : index
    %c0_2 = arith.constant 0 : index
    %1 = vector.load %arg3[%c0_1, %c0_2] : memref<8x1xf32, #tpu.memory_space<vmem>>, vector<8x1xf32>
    %2 = vector.broadcast %1 : vector<8x1xf32> to vector<8x16xf32>
    %3 = arith.mulf %0, %2 : vector<8x16xf32>
    %c0_3 = arith.constant 0 : index
    %c0_4 = arith.constant 0 : index
    %4 = vector.load %arg4[%c0_3, %c0_4] : memref<8x16xf32, #tpu.memory_space<vmem>>, vector<8x16xf32>
    tpu.vector_store %arg4[%c0_3, %c0_4], %3 {strides = array<i32>} : memref<8x16xf32, #tpu.memory_space<vmem>>, vector<8x16xf32>,
    return
  }
  func.func @transform_0(%arg0: i32, %arg1: i32) -> (i32, i32) {
    %c0_i32 = arith.constant 0 : i32
    return %arg0, %arg1 : i32, i32
  }
  func.func @transform_1(%arg0: i32, %arg1: i32) -> (i32, i32) {
    %c0_i32 = arith.constant 0 : i32
    %c0_i32_0 = arith.constant 0 : i32
    return %arg0, %c0_i32 : i32, i32
  }
  func.func @transform_2(%arg0: i32, %arg1: i32) -> (i32, i32) {
    %c0_i32 = arith.constant 0 : i32
    return %arg0, %arg1 : i32, i32
  }
}

</mosaic_0001>

<llo_original>
// kernel: tpu_custom_call.1
$region0: #{tpu_custom_call.1}
  #allocation0 [shape = 'u32[]', space=smem, size = 0x4, offset = 0x4, fixed_abs, tag = 'smem constant byte address 0x4 - core index']
  #allocation1 [shape = 'u32[72,128]{1,0:T(1,128)}', space=vmem, size = 0x9000, scoped, tag = 'internal scratch']
  %s0 = inlined_call_operand.vmem [shape: f32[8,16], index: 0, kind: input, shape index: {}]
  %s1 = inlined_call_operand.vmem [shape: f32[8,1], index: 1, kind: input, shape index: {}]
  %s2 = inlined_call_operand.hbm [shape: f32[8,16], index: 2, kind: output, shape index: {}]
  %s3 = sld [smem:[#allocation0]]
  $region18: #{tpu_custom_call.1} parent=0
    _
  %s5 = ssub.s32 1, %s3
  %s6 = scalar_select 0, %s5, %s3
  $region1: #{tpu_custom_call.1} parent=0
    #allocation2 [shape = 'u8[4096]{0}', space=vmem, size = 0x1000, scoped, tag = 'output window, operand 0, single buffered']
    #allocation3 [shape = 's32[1]{0}', space=sflag, size = 0x4, scoped, tag = 'scoped memory for tpu_custom_call.1']
    %7 = vsyncpa [#allocation3], 0
    // Predicated region
    $region2: #{tpu_custom_call.1} parent=1 // pred_check
      _
    $region3: #{tpu_custom_call.1} parent=1 // pred_check_branch
      %9 = sbr.rel (0) target = $region5
    $region4: #{tpu_custom_call.1} parent=1 // pred_region
      _
    $region5: #{tpu_custom_call.1} parent=1 // pred_fallthru
      _
    // Predicated region
    $region6: #{tpu_custom_call.1} parent=1 // pred_check
      _
    $region7: #{tpu_custom_call.1} parent=1 // pred_check_branch
      %11 = sbr.rel (0) target = $region9
    $region8: #{tpu_custom_call.1} parent=1 // pred_region
      _
    $region9: #{tpu_custom_call.1} parent=1 // pred_fallthru
      _
    %v12 = vld [vmem:[%s0] sm:$0xff]
    %v13 = vld [vmem:[%s1] sm:$0xff]
    %15 = vset.pattern.permute.xlu0 0
    %16 = vperm.xlu0 %15, %v13
    %v17 = vpop.permute.xlu0 %16
    %v19 = vmul.f32 %v12, %v17
    %vm20 = vcmask 130048
    %21 = vst.msk [vmem:[#allocation2] sm:$0xff] %vm20, %v19
    // Predicated region
    $region10: #{tpu_custom_call.1} parent=1 // pred_check
      _
    $region11: #{tpu_custom_call.1} parent=1 // pred_check_branch
      %23 = sbr.rel (0) target = $region13
    $region12: #{tpu_custom_call.1} parent=1 // pred_region
      %25 = vsyncadd [#allocation3], 0
      %s27 = sshll.u32 [#allocation2], 4
      %s28 = int_to_ptr.vmem [resolvable:$true] %s27
      %s29 = sshll.u32 %s2, 4
      %s30 = int_to_ptr.hbm [resolvable:$true] %s29
      %32 = dma.vmem_to_hbm [thread:$0]  %s28, 128, %s30, [#allocation3]
    $region13: #{tpu_custom_call.1} parent=1 // pred_fallthru
      _
    // Predicated region
    $region14: #{tpu_custom_call.1} parent=1 // pred_check
      _
    $region15: #{tpu_custom_call.1} parent=1 // pred_check_branch
      %34 = sbr.rel (0) target = $region17
    $region16: #{tpu_custom_call.1} parent=1 // pred_region
      %36 = dma.done [#allocation3], 128
    $region17: #{tpu_custom_call.1} parent=1 // pred_fallthru
      _
    %37 = vsyncpa [#allocation3], 1

</llo_original>
